<compile_context>
chip_gen: v7x
topology: tpu7x:2x2x1
jax: 0.10.0
libtpu: 0.0.40
codegen_flags: <defaults>
</compile_context>

<pallas_src>
import functools

import numpy as np
import jax
import jax.numpy as jnp
from jax.experimental import pallas as pl
from jax.experimental.pallas import tpu as pltpu


def _round_up(x, m):
    return ((x + m - 1) // m) * m


def _cdiv(a, b):
    return -(-a // b)


def _fused_nll_kernel(x_ref, gt_ref, cm_ref, o_ref, acc_ref, *, n_valid, weights):
    """Grid = (partitions, lane-chunks). Each step handles a (C_total, tn) tile."""
    p = pl.program_id(0)
    j = pl.program_id(1)
    nblk = pl.num_programs(1)

    @pl.when(j == 0)
    def _():
        acc_ref[...] = jnp.zeros_like(acc_ref)

    c_total, tn = x_ref.shape
    n_task = gt_ref.shape[0]

    # Mask lanes past the true element count (logits are NOT padded, so the
    # tail tile may contain garbage / stale VMEM).
    chunk = p * nblk + j
    lane = jax.lax.broadcasted_iota(jnp.int32, (1, tn), 1)
    valid = (chunk * tn + lane) < n_valid                        # (1, tn) bool

    x = jnp.where(valid, x_ref[...].astype(jnp.float32), 0.0)    # (C_total, tn)
    gt = gt_ref[...]                                             # (n_task, tn) int32
    ci = jax.lax.broadcasted_iota(jnp.int32, (c_total, 1), 0)    # global class id / sublane

    # Per-lane weighted gather:  sum_t w_t * x_t[target_t[lane], lane]
    sel = jnp.zeros((1, tn), jnp.float32)
    for t in range(n_task):
        m = ci == gt[t:t + 1, :]                                 # (C_total, tn) one-hot mask
        sel = sel + weights[t] * jnp.sum(jnp.where(m, x, 0.0), axis=0, keepdims=True)

    acc_ref[...] += sel * cm_ref[...]                            # per-lane partial sums (VPU)

    @pl.when(j == nblk - 1)
    def _():
        # single cross-lane reduce per partition; the -mean scale applied here
        o_ref[...] = (jnp.sum(acc_ref[...]) * (-1.0 / n_valid)).reshape(1, 1, 1)


def multi_task_element_nll_loss(inputs, targets, cmap, task_weights,
                                *, lane_tile=32768, partitions=2):
    """total = sum_t w_t * ( -mean_i( inputs[t][i, targets[t][i]] * cmap[i] ) )."""
    n_task = len(inputs)
    assert len(targets) == n_task and len(task_weights) == n_task
    n = int(np.prod(cmap.shape))
    num_class = [int(x.shape[-1]) for x in inputs]
    c_total = int(sum(num_class))
    offs = np.concatenate([[0], np.cumsum(num_class)[:-1]]).astype(np.int64)

    # Lane-dense slab: concatenated class axis on sublanes, elements on lanes.
    # (dtype preserved: bf16/f16 logits are cast to f32 inside the kernel.)
    x_cat = jnp.concatenate(
        [x.reshape(n, c).T for x, c in zip(inputs, num_class)], axis=0)      # (C_total, N)
    # Targets mapped to global class ids, stacked per task.
    gt = jnp.stack(
        [t.reshape(n).astype(jnp.int32) + int(o) for t, o in zip(targets, offs)],
        axis=0)                                                              # (n_task, N)
    cm = cmap.reshape(n).astype(jnp.float32)                                 # (N,)

    # Tiling: elements on the lane axis; big tiles, but never wider than needed.
    tn = min(int(lane_tile), _round_up(_cdiv(n, partitions), 128))
    nblk_pp = _cdiv(n, partitions * tn)
    n_padded = partitions * nblk_pp * tn
    pad = n_padded - n
    if pad:
        gt = jnp.pad(gt, ((0, 0), (0, pad)), constant_values=-1)  # -1 never matches a class
        cm = jnp.pad(cm, ((0, pad),))                             # zero weight on padding
    cm = cm.reshape(1, n_padded)

    last_x_chunk = max((n - 1) // tn, 0)   # clamp: never issue a fully-OOB logits DMA

    kernel = functools.partial(
        _fused_nll_kernel, n_valid=n,
        weights=tuple(float(w) for w in task_weights))

    out = pl.pallas_call(
        kernel,
        out_shape=jax.ShapeDtypeStruct((partitions, 1, 1), jnp.float32),
        grid_spec=pltpu.PrefetchScalarGridSpec(
            num_scalar_prefetch=0,
            grid=(partitions, nblk_pp),
            in_specs=[
                pl.BlockSpec(
                    (c_total, tn),
                    lambda p, j: (0, jnp.minimum(p * nblk_pp + j, last_x_chunk))),
                pl.BlockSpec((n_task, tn), lambda p, j: (0, p * nblk_pp + j)),
                pl.BlockSpec((1, tn), lambda p, j: (0, p * nblk_pp + j)),
            ],
            out_specs=pl.BlockSpec((1, 1, 1), lambda p, j: (p, 0, 0)),
            scratch_shapes=[pltpu.VMEM((1, tn), jnp.float32)],
        ),
        compiler_params=pltpu.CompilerParams(
            dimension_semantics=("parallel", "arbitrary"),
            vmem_limit_bytes=32 * 1024 * 1024),
    )(x_cat, gt, cm)
    return jnp.sum(out)


def _reference(inputs, targets, cmap, task_weights):
    cm = cmap.reshape(-1).astype(jnp.float32)
    total = jnp.float32(0.0)
    for w, x, t in zip(task_weights, inputs, targets):
        tt = t.reshape(-1).astype(jnp.int32)
        sel = x.astype(jnp.float32)[jnp.arange(x.shape[0]), tt]
        total = total + jnp.float32(w) * (-jnp.mean(sel * cm))
    return total


if __name__ == "__main__":
    # Module "parameters" (from __init__ signature):
    num_class = (4, 3)          # per-task class counts
    task_weights = (1.0, 0.5)   # per-task loss weights

    # Small example shapes: batch=2, spatial=16x16 -> N = 512 flattened elements.
    B, H, W = 2, 16, 16
    N = B * H * W

    key = jax.random.PRNGKey(0)
    k0, k1, k2, k3, k4 = jax.random.split(key, 5)

    # per-task log-softmax "inputs" of shape (N, C_t)
    logits0 = jax.random.normal(k0, (N, num_class[0]), dtype=jnp.float32)
    logits1 = jax.random.normal(k1, (N, num_class[1]), dtype=jnp.float32)
    inputs = [jax.nn.log_softmax(logits0, axis=-1),
              jax.nn.log_softmax(logits1, axis=-1)]

    # per-task integer targets of shape (B, H, W)
    targets = [jax.random.randint(k2, (B, H, W), 0, num_class[0], dtype=jnp.int32),
               jax.random.randint(k3, (B, H, W), 0, num_class[1], dtype=jnp.int32)]

    # cost map shared across tasks, shape (B, H, W)
    cmap = jax.random.uniform(k4, (B, H, W), dtype=jnp.float32)

    loss = jax.block_until_ready(
        multi_task_element_nll_loss(inputs, targets, cmap, task_weights))
    ref = jax.block_until_ready(_reference(inputs, targets, cmap, task_weights))
    assert jnp.allclose(loss, ref, rtol=1e-5, atol=1e-5), (loss, ref)

    print("KERNEL_OK")
</pallas_src>

<mosaic_0001>
module attributes {stable_mosaic.version = 11 : i64} {
  func.func @_fused_nll_kernel(%arg0: i32, %arg1: i32, %arg2: memref<7x256xf32, #tpu.memory_space<vmem>>, %arg3: memref<2x256xi32, #tpu.memory_space<vmem>>, %arg4: memref<1x256xf32, #tpu.memory_space<vmem>>, %arg5: memref<1x1x1xf32, #tpu.memory_space<vmem>>, %arg6: memref<1x256xf32, #tpu.memory_space<vmem>>) attributes {dimension_semantics = [#tpu.dimension_semantics<parallel>, #tpu.dimension_semantics<arbitrary>], iteration_bounds = array<i64: 2, 1>, scalar_prefetch = 0 : i64, scratch_operands = 1 : i64, tpu.core_type = #tpu.core_type<tc>, window_params = [{transform_indices = @transform_0, window_bounds = array<i64: 7, 256>}, {transform_indices = @transform_1, window_bounds = array<i64: 2, 256>}, {transform_indices = @transform_2, window_bounds = array<i64: 1, 256>}, {transform_indices = @transform_3, window_bounds = array<i64: 1, 1, 1>}]} {
    %c0_i32 = arith.constant 0 : i32
    %0 = arith.cmpi eq, %arg1, %c0_i32 : i32
    %1 = arith.extui %0 : i1 to i32
    %c0_i32_0 = arith.constant 0 : i32
    %2 = arith.cmpi ne, %1, %c0_i32_0 : i32
    scf.if %2 {
      %cst_19 = arith.constant 0.000000e+00 : f32
      %49 = vector.broadcast %cst_19 : f32 to vector<1x256xf32>
      %c0_20 = arith.constant 0 : index
      %c0_21 = arith.constant 0 : index
      %50 = vector.load %arg6[%c0_20, %c0_21] : memref<1x256xf32, #tpu.memory_space<vmem>>, vector<1x256xf32>
      tpu.vector_store %arg6[%c0_20, %c0_21], %49 {strides = array<i32>} : memref<1x256xf32, #tpu.memory_space<vmem>>, vector<1x256xf32>,
    } else {
    }
    %c1_i32 = arith.constant 1 : i32
    %3 = arith.muli %arg0, %c1_i32 : i32
    %4 = arith.addi %3, %arg1 : i32
    %5 = tpu.iota {dimensions = array<i32: 1>} : vector<1x256xi32>
    %c256_i32 = arith.constant 256 : i32
    %6 = arith.muli %4, %c256_i32 : i32
    %7 = vector.broadcast %6 : i32 to vector<1x256xi32>
    %8 = arith.addi %7, %5 : vector<1x256xi32>
    %c512_i32 = arith.constant 512 : i32
    %9 = vector.broadcast %c512_i32 : i32 to vector<1x256xi32>
    %10 = arith.cmpi slt, %8, %9 : vector<1x256xi32>
    %c0 = arith.constant 0 : index
    %c0_1 = arith.constant 0 : index
    %11 = vector.load %arg2[%c0, %c0_1] : memref<7x256xf32, #tpu.memory_space<vmem>>, vector<7x256xf32>
    %cst = arith.constant 0.000000e+00 : f32
    %12 = vector.shape_cast %10 : vector<1x256xi1> to vector<1x256xi1>
    %13 = vector.broadcast %12 : vector<1x256xi1> to vector<7x256xi1>
    %14 = vector.broadcast %cst : f32 to vector<7x256xf32>
    %15 = arith.select %13, %11, %14 : vector<7x256xi1>, vector<7x256xf32>
    %c0_2 = arith.constant 0 : index
    %c0_3 = arith.constant 0 : index
    %16 = vector.load %arg3[%c0_2, %c0_3] : memref<2x256xi32, #tpu.memory_space<vmem>>, vector<2x256xi32>
    %17 = tpu.iota {dimensions = array<i32: 0>} : vector<7x1xi32>
    %cst_4 = arith.constant 0.000000e+00 : f32
    %18 = vector.broadcast %cst_4 : f32 to vector<1x256xf32>
    %19 = vector.extract_strided_slice %16 {offsets = [0, 0], sizes = [1, 256], strides = [1, 1]} : vector<2x256xi32> to vector<1x256xi32>
    %20 = vector.broadcast %17 : vector<7x1xi32> to vector<7x256xi32>
    %21 = vector.broadcast %19 : vector<1x256xi32> to vector<7x256xi32>
    %22 = arith.cmpi eq, %20, %21 : vector<7x256xi32>
    %cst_5 = arith.constant 0.000000e+00 : f32
    %23 = vector.broadcast %cst_5 : f32 to vector<7x256xf32>
    %24 = arith.select %22, %15, %23 : vector<7x256xi1>, vector<7x256xf32>
    %cst_6 = arith.constant dense<0.000000e+00> : vector<256xf32>
    %25 = vector.multi_reduction <add>, %24, %cst_6 [0] : vector<7x256xf32> to vector<256xf32>
    %26 = vector.shape_cast %25 : vector<256xf32> to vector<1x256xf32>
    %cst_7 = arith.constant 1.000000e+00 : f32
    %27 = vector.broadcast %cst_7 : f32 to vector<1x256xf32>
    %28 = arith.mulf %27, %26 : vector<1x256xf32>
    %29 = arith.addf %18, %28 : vector<1x256xf32>
    %30 = vector.extract_strided_slice %16 {offsets = [1, 0], sizes = [1, 256], strides = [1, 1]} : vector<2x256xi32> to vector<1x256xi32>
    %31 = vector.broadcast %17 : vector<7x1xi32> to vector<7x256xi32>
    %32 = vector.broadcast %30 : vector<1x256xi32> to vector<7x256xi32>
    %33 = arith.cmpi eq, %31, %32 : vector<7x256xi32>
    %cst_8 = arith.constant 0.000000e+00 : f32
    %34 = vector.broadcast %cst_8 : f32 to vector<7x256xf32>
    %35 = arith.select %33, %15, %34 : vector<7x256xi1>, vector<7x256xf32>
    %cst_9 = arith.constant dense<0.000000e+00> : vector<256xf32>
    %36 = vector.multi_reduction <add>, %35, %cst_9 [0] : vector<7x256xf32> to vector<256xf32>
    %37 = vector.shape_cast %36 : vector<256xf32> to vector<1x256xf32>
    %cst_10 = arith.constant 5.000000e-01 : f32
    %38 = vector.broadcast %cst_10 : f32 to vector<1x256xf32>
    %39 = arith.mulf %38, %37 : vector<1x256xf32>
    %40 = arith.addf %29, %39 : vector<1x256xf32>
    %c0_11 = arith.constant 0 : index
    %c0_12 = arith.constant 0 : index
    %41 = vector.load %arg6[%c0_11, %c0_12] : memref<1x256xf32, #tpu.memory_space<vmem>>, vector<1x256xf32>
    %c0_13 = arith.constant 0 : index
    %c0_14 = arith.constant 0 : index
    %42 = vector.load %arg4[%c0_13, %c0_14] : memref<1x256xf32, #tpu.memory_space<vmem>>, vector<1x256xf32>
    %43 = arith.mulf %40, %42 : vector<1x256xf32>
    %44 = arith.addf %41, %43 : vector<1x256xf32>
    %c0_15 = arith.constant 0 : index
    %c0_16 = arith.constant 0 : index
    %45 = vector.load %arg6[%c0_15, %c0_16] : memref<1x256xf32, #tpu.memory_space<vmem>>, vector<1x256xf32>
    tpu.vector_store %arg6[%c0_15, %c0_16], %44 {strides = array<i32>} : memref<1x256xf32, #tpu.memory_space<vmem>>, vector<1x256xf32>,
    %c0_i32_17 = arith.constant 0 : i32
    %46 = arith.cmpi eq, %arg1, %c0_i32_17 : i32
    %47 = arith.extui %46 : i1 to i32
    %c0_i32_18 = arith.constant 0 : i32
    %48 = arith.cmpi ne, %47, %c0_i32_18 : i32
    scf.if %48 {
      %c0_19 = arith.constant 0 : index
      %c0_20 = arith.constant 0 : index
      %49 = vector.load %arg6[%c0_19, %c0_20] : memref<1x256xf32, #tpu.memory_space<vmem>>, vector<1x256xf32>
      %50 = vector.shape_cast %49 : vector<1x256xf32> to vector<1x1x256xf32>
      %cst_21 = arith.constant dense<0.000000e+00> : vector<1xf32>
      %51 = vector.multi_reduction <add>, %50, %cst_21 [1, 2] : vector<1x1x256xf32> to vector<1xf32>
      %52 = vector.shape_cast %51 : vector<1xf32> to vector<1x1x1xf32>
      %53 = vector.extract %52[0, 0, 0] : f32 from vector<1x1x1xf32>
      %cst_22 = arith.constant -0.001953125 : f32
      %54 = arith.mulf %53, %cst_22 : f32
      %55 = vector.broadcast %54 : f32 to vector<1x1x1xf32>
      %c0_23 = arith.constant 0 : index
      %c0_24 = arith.constant 0 : index
      %c0_25 = arith.constant 0 : index
      %56 = vector.load %arg5[%c0_23, %c0_24, %c0_25] : memref<1x1x1xf32, #tpu.memory_space<vmem>>, vector<1x1x1xf32>
      tpu.vector_store %arg5[%c0_23, %c0_24, %c0_25], %55 {strides = array<i32>} : memref<1x1x1xf32, #tpu.memory_space<vmem>>, vector<1x1x1xf32>,
    } else {
    }
    return
  }
  func.func @transform_0(%arg0: i32, %arg1: i32) -> (i32, i32) {
    %c1_i32 = arith.constant 1 : i32
    %0 = arith.muli %arg0, %c1_i32 : i32
    %1 = arith.addi %0, %arg1 : i32
    %c1_i32_0 = arith.constant 1 : i32
    %2 = arith.minsi %1, %c1_i32_0 : i32
    %c0_i32 = arith.constant 0 : i32
    %c0_i32_1 = arith.constant 0 : i32
    return %c0_i32, %2 : i32, i32
  }
  func.func @transform_1(%arg0: i32, %arg1: i32) -> (i32, i32) {
    %c1_i32 = arith.constant 1 : i32
    %0 = arith.muli %arg0, %c1_i32 : i32
    %1 = arith.addi %0, %arg1 : i32
    %c0_i32 = arith.constant 0 : i32
    %c0_i32_0 = arith.constant 0 : i32
    return %c0_i32, %1 : i32, i32
  }
  func.func @transform_2(%arg0: i32, %arg1: i32) -> (i32, i32) {
    %c1_i32 = arith.constant 1 : i32
    %0 = arith.muli %arg0, %c1_i32 : i32
    %1 = arith.addi %0, %arg1 : i32
    %c0_i32 = arith.constant 0 : i32
    %c0_i32_0 = arith.constant 0 : i32
    return %c0_i32, %1 : i32, i32
  }
  func.func @transform_3(%arg0: i32, %arg1: i32) -> (i32, i32, i32) {
    %c0_i32 = arith.constant 0 : i32
    %c0_i32_0 = arith.constant 0 : i32
    %c0_i32_1 = arith.constant 0 : i32
    return %arg0, %c0_i32, %c0_i32_0 : i32, i32, i32
  }
}

</mosaic_0001>

<llo_original>
// kernel: tpu_custom_call.1
$region0: #{tpu_custom_call.1}
  #allocation0 [shape = 'u32[]', space=smem, size = 0x4, offset = 0x4, fixed_abs, tag = 'smem constant byte address 0x4 - core index']
  #allocation1 [shape = 'u32[144,128]{1,0:T(1,128)}', space=vmem, size = 0x12000, scoped, tag = 'internal scratch']
  #allocation2 [shape = 'f32[1,256]{1,0:T(1,128)}', space=vmem, size = 0x400, scoped, tag = 'scratch operand']
  %s0 = inlined_call_operand.hbm [shape: f32[7,512], index: 0, kind: input, shape index: {}]
  %s1 = inlined_call_operand.hbm [shape: s32[2,512], index: 1, kind: input, shape index: {}]
  %s2 = inlined_call_operand.vmem [shape: f32[1,512], index: 2, kind: input, shape index: {}]
  %s3 = inlined_call_operand.vmem [shape: f32[2,1,1], index: 3, kind: output, shape index: {}]
  %s4 = sld [smem:[#allocation0]]
  $region61: #{tpu_custom_call.1} parent=0
    _
  %s6 = ssub.s32 1, %s4
  %s7 = scalar_select 0, %s6, %s4
  $region1: #{tpu_custom_call.1} parent=0
    #allocation3 [shape = 'u8[16384]{0}', space=vmem, size = 0x4000, scoped, tag = 'input window, operand 0']
    #allocation4 [shape = 's32[2]{0}', space=sflag, size = 0x8, scoped, tag = 'scoped memory for tpu_custom_call.1']
    #allocation5 [shape = 'u8[4096]{0}', space=vmem, size = 0x1000, scoped, tag = 'input window, operand 1']
    #allocation6 [shape = 's32[2]{0}', space=sflag, size = 0x8, scoped, tag = 'scoped memory for tpu_custom_call.1']
    %8 = vsyncpa [#allocation4], 0
    %s9 = scalar_lea.sflag [#allocation4], 1
    %10 = vsyncpa %s9, 0
    %11 = vsyncpa [#allocation6], 0
    %s12 = scalar_lea.sflag [#allocation6], 1
    %13 = vsyncpa %s12, 0
    loop: start=0, step=1, limit=4
    $region2: #{tpu_custom_call.1} parent=1 // loop_pre_header
      _
    $region3: #{tpu_custom_call.1} parent=1 // loop_header
      %s15 = sphi 0, %s19
      %p16 = scmp.ge.s32.totalorder %s15, 4
      %s22 = sphi 0, %s34
      %s23 = sphi 0, %s30
      %s24 = sphi 0, %s22
      %s25 = sphi 0, %s23
      %s26 = sphi 0, %s24
      %s27 = sphi 0, %s25
      %s43 = sphi 0, %s45
      %s46 = sphi 0, %s43
      %s47 = sphi 0, %s46
      %s63 = sphi 0, %s47
      %s71 = sphi 0, %s73
      %s74 = sphi 0, %s71
      %s75 = sphi 0, %s74
      %s91 = sphi 0, %s75
      %s99 = sphi 0, %s101
      %s102 = sphi 0, %s99
      %s103 = sphi 0, %s102
      %s119 = sphi 0, %s103
      %s125 = sphi 0, %s127
      %s128 = sphi 0, %s125
      %s129 = sphi 0, %s128
      %s145 = sphi 0, %s129
    $region4: #{tpu_custom_call.1} parent=1 // loop_header_branch
      %18 = sbr.rel (%p16) target = $region8
    $region5: #{tpu_custom_call.1} parent=1 // loop_body
      %s20 = ssub.s32 %s15, 1
      %s21 = ssub.s32 %s15, 2
      %s28 = sadd.s32 1, %s23
      %p29 = scmp.ge.s32.totalorder %s28, 1
      %s30 = scalar_select %p29, 0, %s28
      %s31 = sadd.s32 1, %s22
      %s32 = scalar_select %p29, %s31, %s22
      %p33 = scmp.ge.s32.totalorder %s32, 2
      %s34 = scalar_select %p33, 0, %s32
      %s35 = sadd.s32 %s22, %s23
      %p36 = scmp.lt.s32.totalorder %s35, 1
      %s37 = scalar_select %p36, %s35, 1
      %s38 = sadd.s32 %s34, %s30
      %p39 = scmp.lt.s32.totalorder %s38, 1
      %s40 = scalar_select %p39, %s38, 1
      %s41 = ssub.s32 %s37, %s40
      %p42 = scmp.eq.s32.totalorder %s41, 0
      %s44 = sadd.s32 %s43, 1
      %s45 = scalar_select %p42, %s43, %s44
      %p48 = pneg %p42
      %p49 = scmp.eq.s32.totalorder %s15, 1
      %p50 = por %p48, %p49
      %p51 = scmp.ne.s32.totalorder %s43, %s46
      %p52 = scmp.eq.s32.totalorder %s15, 0
      %p53 = por %p51, %p52
      %p54 = scmp.ne.s32.totalorder %s43, %s46
      %p55 = scmp.eq.s32.totalorder %s20, 1
      %p56 = por %p54, %p55
      %p57 = scmp.ne.s32.totalorder %s46, %s47
      %p58 = scmp.eq.s32.totalorder %s20, 0
      %p59 = por %p57, %p58
      %p60 = scmp.ne.s32.totalorder %s46, %s47
      %p61 = scmp.eq.s32.totalorder %s21, 1
      %p62 = por %p60, %p61
      %p64 = scmp.ne.s32.totalorder %s47, %s63
      %p65 = scmp.eq.s32.totalorder %s21, 0
      %p66 = por %p64, %p65
      %s67 = sadd.s32 %s22, %s23
      %s68 = sadd.s32 %s34, %s30
      %s69 = ssub.s32 %s67, %s68
      %p70 = scmp.eq.s32.totalorder %s69, 0
      %s72 = sadd.s32 %s71, 1
      %s73 = scalar_select %p70, %s71, %s72
      %p76 = pneg %p70
      %p77 = scmp.eq.s32.totalorder %s15, 1
      %p78 = por %p76, %p77
      %p79 = scmp.ne.s32.totalorder %s71, %s74
      %p80 = scmp.eq.s32.totalorder %s15, 0
      %p81 = por %p79, %p80
      %p82 = scmp.ne.s32.totalorder %s71, %s74
      %p83 = scmp.eq.s32.totalorder %s20, 1
      %p84 = por %p82, %p83
      %p85 = scmp.ne.s32.totalorder %s74, %s75
      %p86 = scmp.eq.s32.totalorder %s20, 0
      %p87 = por %p85, %p86
      %p88 = scmp.ne.s32.totalorder %s74, %s75
      %p89 = scmp.eq.s32.totalorder %s21, 1
      %p90 = por %p88, %p89
      %p92 = scmp.ne.s32.totalorder %s75, %s91
      %p93 = scmp.eq.s32.totalorder %s21, 0
      %p94 = por %p92, %p93
      %s95 = sadd.s32 %s22, %s23
      %s96 = sadd.s32 %s34, %s30
      %s97 = ssub.s32 %s95, %s96
      %p98 = scmp.eq.s32.totalorder %s97, 0
      %s100 = sadd.s32 %s99, 1
      %s101 = scalar_select %p98, %s99, %s100
      %p104 = pneg %p98
      %p105 = scmp.eq.s32.totalorder %s15, 1
      %p106 = por %p104, %p105
      %p107 = scmp.ne.s32.totalorder %s99, %s102
      %p108 = scmp.eq.s32.totalorder %s15, 0
      %p109 = por %p107, %p108
      %p110 = scmp.ne.s32.totalorder %s99, %s102
      %p111 = scmp.eq.s32.totalorder %s20, 1
      %p112 = por %p110, %p111
      %p113 = scmp.ne.s32.totalorder %s102, %s103
      %p114 = scmp.eq.s32.totalorder %s20, 0
      %p115 = por %p113, %p114
      %p116 = scmp.ne.s32.totalorder %s102, %s103
      %p117 = scmp.eq.s32.totalorder %s21, 1
      %p118 = por %p116, %p117
      %p120 = scmp.ne.s32.totalorder %s103, %s119
      %p121 = scmp.eq.s32.totalorder %s21, 0
      %p122 = por %p120, %p121
      %s123 = ssub.s32 %s22, %s34
      %p124 = scmp.eq.s32.totalorder %s123, 0
      %s126 = sadd.s32 %s125, 1
      %s127 = scalar_select %p124, %s125, %s126
      %p130 = pneg %p124
      %p131 = scmp.eq.s32.totalorder %s15, 1
      %p132 = por %p130, %p131
      %p133 = scmp.ne.s32.totalorder %s125, %s128
      %p134 = scmp.eq.s32.totalorder %s15, 0
      %p135 = por %p133, %p134
      %p136 = scmp.ne.s32.totalorder %s125, %s128
      %p137 = scmp.eq.s32.totalorder %s20, 1
      %p138 = por %p136, %p137
      %p139 = scmp.ne.s32.totalorder %s128, %s129
      %p140 = scmp.eq.s32.totalorder %s20, 0
      %p141 = por %p139, %p140
      %p142 = scmp.ne.s32.totalorder %s128, %s129
      %p143 = scmp.eq.s32.totalorder %s21, 1
      %p144 = por %p142, %p143
      %p146 = scmp.ne.s32.totalorder %s129, %s145
      %p147 = scmp.eq.s32.totalorder %s21, 0
      %p148 = por %p146, %p147
      %p149 = scmp.le.s32.totalorder 1, %s15
      %p150 = scmp.lt.s32.totalorder %s15, 3
      %p151 = pnand %p149, %p150
      %p152 = pneg %p151
      // Predicated region
      $region9: #{tpu_custom_call.1} parent=5 // pred_check
        _
      $region10: #{tpu_custom_call.1} parent=5 // pred_check_branch
        %154 = sbr.rel (%p151) target = $region12
      $region11: #{tpu_custom_call.1} parent=5 // pred_region
        %s155 = ssub.s32 %s15, 1
      $region12: #{tpu_custom_call.1} parent=5 // pred_fallthru
        _
      %p156 = scmp.lt.s32.totalorder %s15, 2
      // Predicated region
      $region13: #{tpu_custom_call.1} parent=5 // pred_check
        %p157 = pneg %p156
      $region14: #{tpu_custom_call.1} parent=5 // pred_check_branch
        %159 = sbr.rel (%p157) target = $region16
      $region15: #{tpu_custom_call.1} parent=5 // pred_region
        // Predicated region
        $region17: #{tpu_custom_call.1} parent=15 // pred_check
          %p160 = pneg %p53
        $region18: #{tpu_custom_call.1} parent=15 // pred_check_branch
          %162 = sbr.rel (%p160) target = $region20
        $region19: #{tpu_custom_call.1} parent=15 // pred_region
          %s163 = sand.u32 %s43, 1
          %s164 = scalar_lea.sflag [#allocation4], %s163
          %s165 = sand.u32 %s43, 1
          %s166 = smul.addr %s165, 16
          %s167 = scalar_lea.vmem [#allocation3], %s166
          %s168 = sadd.s32 %s22, %s23
          %p169 = scmp.lt.s32.totalorder %s168, 1
          %s170 = scalar_select %p169, %s168, 1
          %s171 = smul.u32 2, %s170
          %s173 = ssub.s32 256, 256
          %174 = vsyncadd %s164, %s173
          %s175 = smul.addr %s171, 128
          %s176 = scalar_lea.hbm %s0, %s175
          %s178 = sshll.u32 %s167, 4
          %s179 = int_to_ptr.vmem [resolvable:$true] %s178
          %181 = dma.hbm_to_vmem [thread:$0]  %s176, 256, %s179, %s164
        $region20: #{tpu_custom_call.1} parent=15 // pred_fallthru
          _
        // Predicated region
        $region21: #{tpu_custom_call.1} parent=15 // pred_check
          %p182 = pneg %p81
        $region22: #{tpu_custom_call.1} parent=15 // pred_check_branch
          %184 = sbr.rel (%p182) target = $region24
        $region23: #{tpu_custom_call.1} parent=15 // pred_region
          %s185 = sand.u32 %s71, 1
          %s186 = scalar_lea.sflag [#allocation6], %s185
          %s187 = sand.u32 %s71, 1
          %s188 = smul.addr %s187, 4
          %s189 = scalar_lea.vmem [#allocation5], %s188
          %s190 = sadd.s32 %s22, %s23
          %s191 = smul.u32 2, %s190
          %s193 = ssub.s32 64, 64
          %194 = vsyncadd %s186, %s193
          %s195 = smul.addr %s191, 32
          %s196 = scalar_lea.hbm %s1, %s195
          %s198 = sshll.u32 %s189, 4
          %s199 = int_to_ptr.vmem [resolvable:$true] %s198
          %201 = dma.hbm_to_vmem [thread:$0]  %s196, 64, %s199, %s186
        $region24: #{tpu_custom_call.1} parent=15 // pred_fallthru
          _
        // Predicated region
        $region25: #{tpu_custom_call.1} parent=15 // pred_check
          %p202 = pneg %p109
        $region26: #{tpu_custom_call.1} parent=15 // pred_check_branch
          %204 = sbr.rel (%p202) target = $region28
        $region27: #{tpu_custom_call.1} parent=15 // pred_region
          %s205 = sadd.s32 %s22, %s23
          %s206 = smul.u32 2, %s205
          %p207 = scmp.lt.s32.totalorder %s206, 3
          %s208 = scalar_select %p207, %s206, 3
          %s209 = scalar_lea.vmem %s2, %s208
          %s210 = sadd.s32 %s22, %s23
          %s211 = smul.u32 2, %s210
        $region28: #{tpu_custom_call.1} parent=15 // pred_fallthru
          _
      $region16: #{tpu_custom_call.1} parent=5 // pred_fallthru
        _
      %p212 = scmp.le.s32.totalorder 1, %s15
      %p213 = scmp.lt.s32.totalorder %s15, 3
      %p214 = pnand %p212, %p213
      %p215 = pneg %p214
      // Predicated region
      $region29: #{tpu_custom_call.1} parent=5 // pred_check
        _
      $region30: #{tpu_custom_call.1} parent=5 // pred_check_branch
        %217 = sbr.rel (%p214) target = $region32
      $region31: #{tpu_custom_call.1} parent=5 // pred_region
        %s218 = ssub.s32 %s15, 1
        %s219 = sand.u32 %s46, 1
        %s220 = scalar_lea.sflag [#allocation4], %s219
        %s221 = sand.u32 %s46, 1
        %s222 = smul.addr %s221, 16
        %s223 = scalar_lea.vmem [#allocation3], %s222
        // Predicated region
        $region33: #{tpu_custom_call.1} parent=31 // pred_check
          %p224 = pneg %p59
        $region34: #{tpu_custom_call.1} parent=31 // pred_check_branch
          %226 = sbr.rel (%p224) target = $region36
        $region35: #{tpu_custom_call.1} parent=31 // pred_region
          %227 = dma.done %s220, 256
        $region36: #{tpu_custom_call.1} parent=31 // pred_fallthru
          _
        %s228 = sand.u32 %s74, 1
        %s229 = scalar_lea.sflag [#allocation6], %s228
        %s230 = sand.u32 %s74, 1
        %s231 = smul.addr %s230, 4
        %s232 = scalar_lea.vmem [#allocation5], %s231
        // Predicated region
        $region37: #{tpu_custom_call.1} parent=31 // pred_check
          %p233 = pneg %p87
        $region38: #{tpu_custom_call.1} parent=31 // pred_check_branch
          %235 = sbr.rel (%p233) target = $region40
        $region39: #{tpu_custom_call.1} parent=31 // pred_region
          %236 = dma.done %s229, 64
        $region40: #{tpu_custom_call.1} parent=31 // pred_fallthru
          _
        %s237 = sand.u32 %s46, 1
        %s238 = scalar_lea.sflag [#allocation4], %s237
        %s239 = sand.u32 %s46, 1
        %s240 = smul.addr %s239, 16
        %s241 = scalar_lea.vmem [#allocation3], %s240
        %p242 = pneg %p59
        %p243 = pneg %p56
        %s244 = sand.u32 %s74, 1
        %s245 = scalar_lea.sflag [#allocation6], %s244
        %s246 = sand.u32 %s74, 1
        %s247 = smul.addr %s246, 4
        %s248 = scalar_lea.vmem [#allocation5], %s247
        %p249 = pneg %p87
        %p250 = pneg %p84
        %s251 = sadd.s32 %s24, %s25
        %s252 = smul.u32 2, %s251
        %p253 = scmp.lt.s32.totalorder %s252, 3
        %s254 = scalar_select %p253, %s252, 3
        %s255 = scalar_lea.vmem %s2, %s254
        %p256 = pneg %p115
        %p257 = pneg %p112
        %p258 = pneg %p141
        %p259 = pneg %p138
        %p260 = scmp.lt.s32.totalorder %s24, 1
        %s261 = scalar_select %p260, %s24, 1
        %s262 = scalar_lea.vmem %s3, %s261
        %s263 = sadd.s32 %s24, %s25
        %p264 = scmp.lt.s32.totalorder %s263, 1
        %s265 = scalar_select %p264, %s263, 1
        %s266 = smul.u32 2, %s265
        %s267 = sadd.s32 %s24, %s25
        %s268 = smul.u32 2, %s267
        %s269 = sadd.s32 %s24, %s25
        %s270 = smul.u32 2, %s269
        %p271 = scmp.lt.s32.totalorder %s270, 3
        %s272 = scalar_select %p271, %s270, 3
        %s273 = scalar_lea.vmem %s2, %s272
        %s274 = sadd.s32 %s24, %s25
        %s275 = smul.u32 2, %s274
        %p276 = scmp.lt.s32.totalorder %s24, 1
        %s277 = scalar_select %p276, %s24, 1
        %s278 = scalar_lea.vmem %s3, %s277
        %p279 = scmp.eq.s32.totalorder %s25, 0
        // Predicated region
        $region41: #{tpu_custom_call.1} parent=31 // pred_check
          %p280 = pneg %p279
        $region42: #{tpu_custom_call.1} parent=31 // pred_check_branch
          %282 = sbr.rel (%p280) target = $region44
        $region43: #{tpu_custom_call.1} parent=31 // pred_region
          %v283 = vlaneseq
          %vm284 = vcmp.ge.s32.totalorder %v283, 0
          %vm285 = vcmp.lt.s32.totalorder %v283, 256
          %vm286 = vmand %vm284, %vm285
          %287 = vst.msk [vmem:[#allocation2] sm:$0x3] %vm286, 0.0
        $region44: #{tpu_custom_call.1} parent=31 // pred_fallthru
          _
        %s288 = sadd.s32 %s24, %s25
        %v289 = vlaneseq
        %v290 = vand.u32 %v289, 127
        %v291 = vadd.s32 %v290, 128
        %s292 = smul.u32 %s288, 256
        %v293 = vstv %s292
        %v294 = vadd.s32 %v293, %v290
        %v295 = vadd.s32 %v293, %v291
        %vm296 = vcmp.lt.s32.totalorder %v294, 512
        %vm297 = vcmp.lt.s32.totalorder %v295, 512
        %v298 = vld [vmem:[%s223] sm:$0x7f]
        %v299 = vld [vmem:[%s223 + $0x8] sm:$0x7f]
        %v300 = vsel %vm296, 1, 0
        %v301 = vsel %vm297, 1, 0
        %vm302 = vcmp.eq.s32.totalorder %v300, 1
        %vm303 = vcmp.eq.s32.totalorder %v301, 1
        %v304 = vsel %vm302, %v298, 0.0
        %v305 = vsel %vm303, %v299, 0.0
        %v306 = vld [vmem:[%s232] sm:$0xf]
        %v307 = vlaneseq
        %v308 = vshrl.u32 %v307, 7
        %v309 = vlaneseq
        %v310 = vshrl.u32 %v309, 7
        %v311 = vsub.s32 0, %v310
        %v312 = vrot.slane %v306, %v311
        %v313 = vlaneseq
        %v314 = vshrl.u32 %v313, 7
        %v315 = vsub.s32 2, %v314
        %v316 = vrot.slane %v306, %v315
        %v317 = vlaneseq
        %v318 = vshrl.u32 %v317, 7
        %v319 = vsub.s32 0, %v318
        %v320 = vrot.slane %v312, %v319
        %v321 = vlaneseq
        %v322 = vshrl.u32 %v321, 7
        %v323 = vsub.s32 0, %v322
        %v324 = vrot.slane %v316, %v323
        %vm325 = vcmp.eq.s32.totalorder %v308, %v320
        %vm326 = vcmp.eq.s32.totalorder %v308, %v324
        %v327 = vsel %vm325, %v304, 0.0
        %v328 = vsel %vm326, %v305, 0.0
        %vm329 = vcmask 1046528
        %v330 = vsel %vm329, %v327, 0.0
        %v331 = vrot.slane %v330, 4
        %v332 = vadd.f32 %v330, %v331
        %v333 = vrot.slane %v332, 2
        %v334 = vadd.f32 %v332, %v333
        %v335 = vrot.slane %v334, 1
        %v336 = vadd.f32 %v334, %v335
        %v337 = vsel %vm329, %v328, 0.0
        %v338 = vrot.slane %v337, 4
        %v339 = vadd.f32 %v337, %v338
        %v340 = vrot.slane %v339, 2
        %v341 = vadd.f32 %v339, %v340
        %v342 = vrot.slane %v341, 1
        %v343 = vadd.f32 %v341, %v342
        %v344 = vadd.f32 %v336, 0.0
        %v345 = vadd.f32 %v343, 0.0
        %v346 = vlaneseq
        %v347 = vshrl.u32 %v346, 7
        %v348 = vsub.s32 1, %v347
        %v349 = vrot.slane %v306, %v348
        %v350 = vlaneseq
        %v351 = vshrl.u32 %v350, 7
        %v352 = vsub.s32 3, %v351
        %v353 = vrot.slane %v306, %v352
        %v354 = vlaneseq
        %v355 = vshrl.u32 %v354, 7
        %v356 = vsub.s32 1, %v355
        %v357 = vrot.slane %v349, %v356
        %v358 = vlaneseq
        %v359 = vshrl.u32 %v358, 7
        %v360 = vsub.s32 1, %v359
        %v361 = vrot.slane %v353, %v360
        %vm362 = vcmp.eq.s32.totalorder %v308, %v357
        %vm363 = vcmp.eq.s32.totalorder %v308, %v361
        %v364 = vsel %vm362, %v304, 0.0
        %v365 = vsel %vm363, %v305, 0.0
        %v366 = vsel %vm329, %v364, 0.0
        %v367 = vrot.slane %v366, 4
        %v368 = vadd.f32 %v366, %v367
        %v369 = vrot.slane %v368, 2
        %v370 = vadd.f32 %v368, %v369
        %v371 = vrot.slane %v370, 1
        %v372 = vadd.f32 %v370, %v371
        %v373 = vsel %vm329, %v365, 0.0
        %v374 = vrot.slane %v373, 4
        %v375 = vadd.f32 %v373, %v374
        %v376 = vrot.slane %v375, 2
        %v377 = vadd.f32 %v375, %v376
        %v378 = vrot.slane %v377, 1
        %v379 = vadd.f32 %v377, %v378
        %v380 = vmul.f32 %v372, 0.5
        %v381 = vmul.f32 %v379, 0.5
        %v382 = vadd.f32 %v344, %v380
        %v383 = vadd.f32 %v345, %v381
        %v384 = vld [vmem:[#allocation2] sm:$0x3]
        %v385 = vld [vmem:[%s273] sm:$0x3]
        %v387 = vlaneseq
        %v388 = vshrl.u32 %v387, 7
        %v389 = vsub.s32 0, %v388
        %v390 = vrot.slane %v385, %v389
        %v391 = vlaneseq
        %v392 = vshrl.u32 %v391, 7
        %v393 = vsub.s32 1, %v392
        %v394 = vrot.slane %v385, %v393
        %v397 = vmul.f32 %v382, %v390
        %v398 = vmul.f32 %v383, %v394
        %v401 = vcombine.low %v397, %v398
        %v403 = vunpack.c.l.s4 1966171168
        %v404 = vunpack.c.0.s8 %v403
        %v405 = vlaneseq
        %v406 = vshrl.u32 %v405, 7
        %v407 = vsub.s32 %v404, %v406
        %v408 = vrot.slane %v401, %v407
        %v410 = vunpack.c.l.s4 1966171168
        %v411 = vunpack.c.0.s8 %v410
        %v412 = vlaneseq
        %v413 = vshrl.u32 %v412, 7
        %v414 = vsub.s32 %v411, %v413
        %v415 = vrot.slane %v408, %v414
        %v417 = vadd.f32 %v384, %v415
        %v418 = vlaneseq
        %vm419 = vcmp.ge.s32.totalorder %v418, 0
        %vm420 = vcmp.lt.s32.totalorder %v418, 256
        %vm421 = vmand %vm419, %vm420
        %422 = vst.msk [vmem:[#allocation2] sm:$0x3] %vm421, %v417
        // Predicated region
        $region45: #{tpu_custom_call.1} parent=31 // pred_check
          %p423 = pneg %p279
        $region46: #{tpu_custom_call.1} parent=31 // pred_check_branch
          %425 = sbr.rel (%p423) target = $region48
        $region47: #{tpu_custom_call.1} parent=31 // pred_region
          %v426 = vld [vmem:[#allocation2] sm:$0x3]
          %v428 = vlaneseq
          %v429 = vshrl.u32 %v428, 7
          %v430 = vsub.s32 0, %v429
          %v431 = vrot.slane %v426, %v430
          %v432 = vlaneseq
          %v433 = vshrl.u32 %v432, 7
          %v434 = vsub.s32 1, %v433
          %v435 = vrot.slane %v426, %v434
          %vm438 = vcmask 1040384
          %v439 = vsel %vm438, %v431, 0.0
          %v440 = vsel %vm438, %v435, 0.0
          %v441 = vadd.f32 %v439, %v440
          %442 = vadd.xlane.f32.xlu0 %v441
          %v443 = vpop.xlane.xlu0 %442
          %v444 = vrot.slane %v443, 4
          %v445 = vadd.f32 %v443, %v444
          %v446 = vrot.slane %v445, 2
          %v447 = vadd.f32 %v445, %v446
          %v448 = vrot.slane %v447, 1
          %v449 = vadd.f32 %v447, %v448
          %s450 = vtos %v449
          %s451 = smul.f32 %s450, -0.001953125
          %v452 = vstv %s451
          %vm453 = vcmask 0
          %454 = vst.msk [vmem:[%s278] sm:$0x1] %vm453, %v452
        $region48: #{tpu_custom_call.1} parent=31 // pred_fallthru
          _
        %p455 = scmp.lt.s32.totalorder %s24, 1
        %s456 = scalar_select %p455, %s24, 1
        %s457 = scalar_lea.vmem %s3, %s456
        // Predicated region
        $region49: #{tpu_custom_call.1} parent=31 // pred_check
          %p458 = pneg %p138
        $region50: #{tpu_custom_call.1} parent=31 // pred_check_branch
          %460 = sbr.rel (%p458) target = $region52
        $region51: #{tpu_custom_call.1} parent=31 // pred_region
          _
        $region52: #{tpu_custom_call.1} parent=31 // pred_fallthru
          _
      $region32: #{tpu_custom_call.1} parent=5 // pred_fallthru
        _
      %p461 = scmp.le.s32.totalorder 2, %s15
      // Predicated region
      $region53: #{tpu_custom_call.1} parent=5 // pred_check
        %p462 = pneg %p461
      $region54: #{tpu_custom_call.1} parent=5 // pred_check_branch
        %464 = sbr.rel (%p462) target = $region56
      $region55: #{tpu_custom_call.1} parent=5 // pred_region
        %s465 = ssub.s32 %s15, 2
        // Predicated region
        $region57: #{tpu_custom_call.1} parent=55 // pred_check
          %p466 = pneg %p144
        $region58: #{tpu_custom_call.1} parent=55 // pred_check_branch
          %468 = sbr.rel (%p466) target = $region60
        $region59: #{tpu_custom_call.1} parent=55 // pred_region
          %p469 = scmp.lt.s32.totalorder %s26, 1
          %s470 = scalar_select %p469, %s26, 1
          %s471 = scalar_lea.vmem %s3, %s470
        $region60: #{tpu_custom_call.1} parent=55 // pred_fallthru
          _
      $region56: #{tpu_custom_call.1} parent=5 // pred_fallthru
        _
    $region6: #{tpu_custom_call.1} parent=1 // loop_footer
      %s19 = sadd.s32 1, %s15
    $region7: #{tpu_custom_call.1} parent=1 // loop_footer_branch
      %14 = sbr.rel target = $region3
    $region8: #{tpu_custom_call.1} parent=1 // loop_exit
      _
    %472 = vsyncpa [#allocation4], 1
    %s473 = scalar_lea.sflag [#allocation4], 1
    %474 = vsyncpa %s473, 1
    %475 = vsyncpa [#allocation6], 1
    %s476 = scalar_lea.sflag [#allocation6], 1
    %477 = vsyncpa %s476, 1

</llo_original>
